<compile_context>
chip_gen: v7x
topology: tpu7x:2x2x1
jax: 0.10.0
libtpu: 0.0.40
codegen_flags: <defaults>
</compile_context>

<pallas_src>
import jax
import jax.numpy as jnp
from jax.experimental import pallas as pl
from jax.experimental.pallas import tpu as pltpu


def _classifier_kernel(e1_ref, e2_ref, w1a_ref, w1b_ref, b1_ref, w2_ref,
                       b2_ref, o_ref):
    # Layer 1: split-weight matmul replaces cat([e1, e2]) @ W1.
    # bf16 operands, f32 accumulation on the MXU.
    e1 = e1_ref[...].astype(jnp.bfloat16)
    e2 = e2_ref[...].astype(jnp.bfloat16)
    h = jnp.dot(e1, w1a_ref[...], preferred_element_type=jnp.float32)
    h = h + jnp.dot(e2, w1b_ref[...], preferred_element_type=jnp.float32)
    h = jnp.maximum(h + b1_ref[...], 0.0)                       # (TB, H) f32

    # Dropout(0.2): identity in eval/inference mode.
    # TODO(synk): training-mode dropout (pltpu.prng_seed/prng_random_bits +
    #             1/(1-p) scaling) not implemented.

    # Layer 2 (H -> 1) on VPU + XLU: broadcast multiply + lane reduce.
    # Avoids a 1-of-256-columns MXU pass.
    z = jnp.sum(h * w2_ref[...], axis=-1, keepdims=True) + b2_ref[0, 0]
    o_ref[...] = jax.nn.sigmoid(z)                               # (TB, 1)


def _round_up(x, m):
    return ((x + m - 1) // m) * m


def embedding_classifier(emb1, emb2, w1, b1, w2, b2, *, tb=256):
    """emb1, emb2: (B, D/2) float32. w1: (D, H), b1: (H,), w2: (H, 1), b2: (1,).
    Returns (B,) float32 probabilities."""
    B, half = emb1.shape
    D, H = w1.shape
    assert D == 2 * half

    # Split W1 so the kernel never needs to concatenate the embeddings, and
    # ship the halves as bf16 so the dominant weight DMA shrinks 2x.
    w1a = w1[:half, :].astype(jnp.bfloat16)          # (half, H)
    w1b = w1[half:, :].astype(jnp.bfloat16)          # (half, H)
    b1_2d = b1.reshape(1, H).astype(jnp.float32)     # (1, H)  VMEM
    w2_row = w2.reshape(1, H).astype(jnp.float32)    # (1, H)  VMEM (layer-2 row)
    b2_2d = b2.reshape(1, 1).astype(jnp.float32)     # (1, 1)  SMEM scalar

    # Batch tiling: TB multiple of 8 (sublane), capped at `tb` (256 default).
    TB = min(_round_up(B, 8), _round_up(tb, 8))
    Bp = _round_up(B, TB)
    if Bp != B:
        pad = Bp - B
        emb1 = jnp.pad(emb1, ((0, pad), (0, 0)))
        emb2 = jnp.pad(emb2, ((0, pad), (0, 0)))
    n_tiles = Bp // TB

    out = pl.pallas_call(
        _classifier_kernel,
        out_shape=jax.ShapeDtypeStruct((Bp, 1), jnp.float32),
        grid=(n_tiles,),
        in_specs=[
            pl.BlockSpec((TB, half), lambda i: (i, 0)),   # emb1 tile
            pl.BlockSpec((TB, half), lambda i: (i, 0)),   # emb2 tile
            pl.BlockSpec((half, H), lambda i: (0, 0)),    # W1a (resident)
            pl.BlockSpec((half, H), lambda i: (0, 0)),    # W1b (resident)
            pl.BlockSpec((1, H), lambda i: (0, 0)),       # b1  (resident)
            pl.BlockSpec((1, H), lambda i: (0, 0)),       # w2 row (resident)
            pl.BlockSpec(memory_space=pltpu.MemorySpace.SMEM),  # b2 scalar
        ],
        out_specs=pl.BlockSpec((TB, 1), lambda i: (i, 0)),
        compiler_params=pltpu.CompilerParams(
            dimension_semantics=("parallel",)),
    )(emb1, emb2, w1a, w1b, b1_2d, w2_row, b2_2d)

    return out[:B, 0]   # squeeze(1), drop padded rows


if __name__ == "__main__":
    # Small, deterministic problem: batch=20, each embedding 128 -> input_dim=256.
    # tb=8 is used only to exercise the multi-tile + padded-batch path at this
    # toy size; production default is tb=256.
    B, HALF, HID, OUT = 20, 128, 512, 1
    D = 2 * HALF

    key = jax.random.PRNGKey(0)
    k1, k2, k3, k4, k5, k6 = jax.random.split(key, 6)

    emb1 = jax.random.normal(k1, (B, HALF), dtype=jnp.float32)
    emb2 = jax.random.normal(k2, (B, HALF), dtype=jnp.float32)

    # Deterministic parameter init (Kaiming-ish scaling), weights stored (in, out).
    w1 = jax.random.normal(k3, (D, HID), dtype=jnp.float32) * (1.0 / jnp.sqrt(D))
    b1 = jax.random.normal(k4, (HID,), dtype=jnp.float32) * 0.01
    w2 = jax.random.normal(k5, (HID, OUT), dtype=jnp.float32) * (1.0 / jnp.sqrt(HID))
    b2 = jax.random.normal(k6, (OUT,), dtype=jnp.float32) * 0.01

    out = embedding_classifier(emb1, emb2, w1, b1, w2, b2, tb=8)
    out = jax.block_until_ready(out)
    assert out.shape == (B,)

    # Reference 1: mirrors kernel precision (bf16 layer-1 operands, f32 accum).
    combined_bf = jnp.concatenate([emb1, emb2], axis=1).astype(jnp.bfloat16)
    h_ref = jnp.maximum(
        jnp.dot(combined_bf, w1.astype(jnp.bfloat16),
                preferred_element_type=jnp.float32) + b1, 0.0)
    y_ref = jax.nn.sigmoid(h_ref @ w2 + b2)[:, 0]
    assert jnp.allclose(out, y_ref, atol=1e-4, rtol=1e-4)

    # Reference 2: full f32 (original module semantics), loose tolerance for bf16.
    combined = jnp.concatenate([emb1, emb2], axis=1)
    h32 = jnp.maximum(combined @ w1 + b1, 0.0)
    y32 = jax.nn.sigmoid(h32 @ w2 + b2)[:, 0]
    assert jnp.allclose(out, y32, atol=3e-2, rtol=3e-2)

    print("KERNEL_OK")
</pallas_src>

<mosaic_0001>
module attributes {stable_mosaic.version = 11 : i64} {
  func.func @_classifier_kernel(%arg0: i32, %arg1: memref<8x128xf32, #tpu.memory_space<vmem>>, %arg2: memref<8x128xf32, #tpu.memory_space<vmem>>, %arg3: memref<128x512xbf16, #tpu.memory_space<vmem>>, %arg4: memref<128x512xbf16, #tpu.memory_space<vmem>>, %arg5: memref<1x512xf32, #tpu.memory_space<vmem>>, %arg6: memref<1x512xf32, #tpu.memory_space<vmem>>, %arg7: memref<1x1xf32, #tpu.memory_space<smem>>, %arg8: memref<8x1xf32, #tpu.memory_space<vmem>>) attributes {dimension_semantics = [#tpu.dimension_semantics<parallel>], iteration_bounds = array<i64: 3>, scalar_prefetch = 0 : i64, scratch_operands = 0 : i64, tpu.core_type = #tpu.core_type<tc>, window_params = [{transform_indices = @transform_0, window_bounds = array<i64: 8, 128>}, {transform_indices = @transform_1, window_bounds = array<i64: 8, 128>}, {pipeline_mode = #tpu.pipeline_mode<synchronous>, transform_indices = @transform_2, window_bounds = array<i64: 128, 512>}, {pipeline_mode = #tpu.pipeline_mode<synchronous>, transform_indices = @transform_3, window_bounds = array<i64: 128, 512>}, {pipeline_mode = #tpu.pipeline_mode<synchronous>, transform_indices = @transform_4, window_bounds = array<i64: 1, 512>}, {pipeline_mode = #tpu.pipeline_mode<synchronous>, transform_indices = @transform_5, window_bounds = array<i64: 1, 512>}, {transform_indices = @transform_6, window_bounds = array<i64: 1, 1>}, {transform_indices = @transform_7, window_bounds = array<i64: 8, 1>}]} {
    %c0 = arith.constant 0 : index
    %c0_0 = arith.constant 0 : index
    %0 = vector.load %arg1[%c0, %c0_0] : memref<8x128xf32, #tpu.memory_space<vmem>>, vector<8x128xf32>
    %1 = arith.truncf %0 : vector<8x128xf32> to vector<8x128xbf16>
    %c0_1 = arith.constant 0 : index
    %c0_2 = arith.constant 0 : index
    %2 = vector.load %arg2[%c0_1, %c0_2] : memref<8x128xf32, #tpu.memory_space<vmem>>, vector<8x128xf32>
    %3 = arith.truncf %2 : vector<8x128xf32> to vector<8x128xbf16>
    %c0_3 = arith.constant 0 : index
    %c0_4 = arith.constant 0 : index
    %4 = vector.load %arg3[%c0_3, %c0_4] : memref<128x512xbf16, #tpu.memory_space<vmem>>, vector<128x512xbf16>
    %cst = arith.constant dense<0.000000e+00> : vector<8x512xf32>
    %5 = tpu.matmul %1, %4, %cst {dimension_numbers = #tpu.dot_dimension_numbers<[1], [0], [0], [1], [0, 0, 1, 1], [], []>} : vector<8x128xbf16>, vector<128x512xbf16>, vector<8x512xf32> -> vector<8x512xf32>
    %c0_5 = arith.constant 0 : index
    %c0_6 = arith.constant 0 : index
    %6 = vector.load %arg4[%c0_5, %c0_6] : memref<128x512xbf16, #tpu.memory_space<vmem>>, vector<128x512xbf16>
    %cst_7 = arith.constant dense<0.000000e+00> : vector<8x512xf32>
    %7 = tpu.matmul %3, %6, %cst_7 {dimension_numbers = #tpu.dot_dimension_numbers<[1], [0], [0], [1], [0, 0, 1, 1], [], []>} : vector<8x128xbf16>, vector<128x512xbf16>, vector<8x512xf32> -> vector<8x512xf32>
    %8 = arith.addf %5, %7 : vector<8x512xf32>
    %c0_8 = arith.constant 0 : index
    %c0_9 = arith.constant 0 : index
    %9 = vector.load %arg5[%c0_8, %c0_9] : memref<1x512xf32, #tpu.memory_space<vmem>>, vector<1x512xf32>
    %10 = vector.broadcast %9 : vector<1x512xf32> to vector<8x512xf32>
    %11 = arith.addf %8, %10 : vector<8x512xf32>
    %cst_10 = arith.constant 0.000000e+00 : f32
    %12 = vector.broadcast %cst_10 : f32 to vector<8x512xf32>
    %13 = arith.maximumf %11, %12 : vector<8x512xf32>
    %c0_11 = arith.constant 0 : index
    %c0_12 = arith.constant 0 : index
    %14 = vector.load %arg6[%c0_11, %c0_12] : memref<1x512xf32, #tpu.memory_space<vmem>>, vector<1x512xf32>
    %15 = vector.broadcast %14 : vector<1x512xf32> to vector<8x512xf32>
    %16 = arith.mulf %13, %15 : vector<8x512xf32>
    %cst_13 = arith.constant dense<0.000000e+00> : vector<8xf32>
    %17 = vector.multi_reduction <add>, %16, %cst_13 [1] : vector<8x512xf32> to vector<8xf32>
    %18 = vector.shape_cast %17 : vector<8xf32> to vector<8x1xf32>
    %c0_14 = arith.constant 0 : index
    %c0_15 = arith.constant 0 : index
    %19 = memref.load %arg7[%c0_14, %c0_15] : memref<1x1xf32, #tpu.memory_space<smem>>
    %20 = vector.broadcast %19 : f32 to vector<8x1xf32>
    %21 = arith.addf %18, %20 : vector<8x1xf32>
    %22 = arith.negf %21 : vector<8x1xf32>
    %23 = math.exp %22 : vector<8x1xf32>
    %cst_16 = arith.constant 1.000000e+00 : f32
    %24 = vector.broadcast %cst_16 : f32 to vector<8x1xf32>
    %25 = arith.addf %24, %23 : vector<8x1xf32>
    %26 = arith.divf %24, %25 : vector<8x1xf32>
    %c0_17 = arith.constant 0 : index
    %c0_18 = arith.constant 0 : index
    %27 = vector.load %arg8[%c0_17, %c0_18] : memref<8x1xf32, #tpu.memory_space<vmem>>, vector<8x1xf32>
    tpu.vector_store %arg8[%c0_17, %c0_18], %26 {strides = array<i32>} : memref<8x1xf32, #tpu.memory_space<vmem>>, vector<8x1xf32>,
    return
  }
  func.func @transform_0(%arg0: i32) -> (i32, i32) {
    %c0_i32 = arith.constant 0 : i32
    %c0_i32_0 = arith.constant 0 : i32
    return %arg0, %c0_i32 : i32, i32
  }
  func.func @transform_1(%arg0: i32) -> (i32, i32) {
    %c0_i32 = arith.constant 0 : i32
    %c0_i32_0 = arith.constant 0 : i32
    return %arg0, %c0_i32 : i32, i32
  }
  func.func @transform_2(%arg0: i32) -> (i32, i32) {
    %c0_i32 = arith.constant 0 : i32
    %c0_i32_0 = arith.constant 0 : i32
    %c0_i32_1 = arith.constant 0 : i32
    return %c0_i32, %c0_i32_0 : i32, i32
  }
  func.func @transform_3(%arg0: i32) -> (i32, i32) {
    %c0_i32 = arith.constant 0 : i32
    %c0_i32_0 = arith.constant 0 : i32
    %c0_i32_1 = arith.constant 0 : i32
    return %c0_i32, %c0_i32_0 : i32, i32
  }
  func.func @transform_4(%arg0: i32) -> (i32, i32) {
    %c0_i32 = arith.constant 0 : i32
    %c0_i32_0 = arith.constant 0 : i32
    %c0_i32_1 = arith.constant 0 : i32
    return %c0_i32, %c0_i32_0 : i32, i32
  }
  func.func @transform_5(%arg0: i32) -> (i32, i32) {
    %c0_i32 = arith.constant 0 : i32
    %c0_i32_0 = arith.constant 0 : i32
    %c0_i32_1 = arith.constant 0 : i32
    return %c0_i32, %c0_i32_0 : i32, i32
  }
  func.func @transform_6(%arg0: i32) -> (i32, i32) {
    %c0_i32 = arith.constant 0 : i32
    %c0_i32_0 = arith.constant 0 : i32
    %c0_i32_1 = arith.constant 0 : i32
    return %c0_i32, %c0_i32_0 : i32, i32
  }
  func.func @transform_7(%arg0: i32) -> (i32, i32) {
    %c0_i32 = arith.constant 0 : i32
    %c0_i32_0 = arith.constant 0 : i32
    return %arg0, %c0_i32 : i32, i32
  }
}

</mosaic_0001>

<llo_original>
// kernel: tpu_custom_call.1
$region0: #{tpu_custom_call.1}
  #allocation0 [shape = 'u32[]', space=smem, size = 0x4, offset = 0x4, fixed_abs, tag = 'smem constant byte address 0x4 - core index']
  #allocation1 [shape = 'u32[144,128]{1,0:T(1,128)}', space=vmem, size = 0x12000, scoped, tag = 'internal scratch']
  #allocation2 [shape = 'f32[1,1]{1,0:T(1,128)S(6)}', space=smem, size = 0x200, scoped, tag = 'scoped memory for tpu_custom_call.1']
  %s0 = inlined_call_operand.hbm [shape: f32[24,128], index: 0, kind: input, shape index: {}]
  %s1 = inlined_call_operand.hbm [shape: f32[24,128], index: 1, kind: input, shape index: {}]
  %s2 = inlined_call_operand.hbm [shape: bf16[128,512], index: 2, kind: input, shape index: {}]
  %s3 = inlined_call_operand.hbm [shape: bf16[128,512], index: 3, kind: input, shape index: {}]
  %s4 = inlined_call_operand.vmem [shape: f32[1,512], index: 4, kind: input, shape index: {}]
  %s5 = inlined_call_operand.vmem [shape: f32[1,512], index: 5, kind: input, shape index: {}]
  %s6 = inlined_call_operand.<no memory space> [shape: f32[1,1], index: 6, kind: input, shape index: {}]
  %s7 = inlined_call_operand.vmem [shape: f32[24,1], index: 7, kind: output, shape index: {}]
  %s8 = sld [smem:[#allocation0]]
  $region77: #{tpu_custom_call.1} parent=0
    _
  %s10 = ssub.s32 1, %s8
  %s11 = scalar_select 0, %s10, %s8
  %12 = sst [smem:[#allocation2]] %s6
  $region1: #{tpu_custom_call.1} parent=0
    #allocation3 [shape = 'u8[8192]{0}', space=vmem, size = 0x2000, scoped, tag = 'input window, operand 0']
    #allocation4 [shape = 's32[2]{0}', space=sflag, size = 0x8, scoped, tag = 'scoped memory for tpu_custom_call.1']
    #allocation5 [shape = 'u8[8192]{0}', space=vmem, size = 0x2000, scoped, tag = 'input window, operand 1']
    #allocation6 [shape = 's32[2]{0}', space=sflag, size = 0x8, scoped, tag = 'scoped memory for tpu_custom_call.1']
    #allocation7 [shape = 'u8[131072]{0}', space=vmem, size = 0x20000, scoped, tag = 'input window, operand 2, single buffered']
    #allocation8 [shape = 'u8[131072]{0}', space=vmem, size = 0x20000, scoped, tag = 'input window, operand 3, single buffered']
    #allocation9 [shape = 's32[1]{0}', space=sflag, size = 0x4, scoped, tag = 'scoped memory for tpu_custom_call.1']
    %13 = vsyncpa [#allocation4], 0
    %s14 = scalar_lea.sflag [#allocation4], 1
    %15 = vsyncpa %s14, 0
    %16 = vsyncpa [#allocation6], 0
    %s17 = scalar_lea.sflag [#allocation6], 1
    %18 = vsyncpa %s17, 0
    %19 = vsyncpa [#allocation9], 0
    loop: start=0, step=1, limit=5
    $region2: #{tpu_custom_call.1} parent=1 // loop_pre_header
      _
    $region3: #{tpu_custom_call.1} parent=1 // loop_header
      %s21 = sphi 0, %s25
      %p22 = scmp.ge.s32.totalorder %s21, 5
      %s31 = sphi 0, %s33
      %s34 = sphi 0, %s31
      %s35 = sphi 0, %s34
      %s51 = sphi 0, %s35
      %s57 = sphi 0, %s59
      %s60 = sphi 0, %s57
      %s61 = sphi 0, %s60
      %s77 = sphi 0, %s61
      %s81 = sphi 0, %s81
      %s83 = sphi 0, %s81
      %s84 = sphi 0, %s83
      %s98 = sphi 0, %s84
      %s102 = sphi 0, %s102
      %s104 = sphi 0, %s102
      %s105 = sphi 0, %s104
      %s119 = sphi 0, %s105
      %s123 = sphi 0, %s123
      %s125 = sphi 0, %s123
      %s126 = sphi 0, %s125
      %s140 = sphi 0, %s126
      %s144 = sphi 0, %s144
      %s146 = sphi 0, %s144
      %s147 = sphi 0, %s146
      %s161 = sphi 0, %s147
      %s165 = sphi 0, %s165
      %s167 = sphi 0, %s165
      %s168 = sphi 0, %s167
      %s182 = sphi 0, %s168
      %s188 = sphi 0, %s190
      %s191 = sphi 0, %s188
      %s192 = sphi 0, %s191
      %s208 = sphi 0, %s192
    $region4: #{tpu_custom_call.1} parent=1 // loop_header_branch
      %24 = sbr.rel (%p22) target = $region8
    $region5: #{tpu_custom_call.1} parent=1 // loop_body
      %s26 = ssub.s32 %s21, 1
      %s27 = ssub.s32 %s21, 2
      %s28 = sadd.s32 %s21, 1
      %s29 = ssub.s32 %s21, %s28
      %p30 = scmp.eq.s32.totalorder %s29, 0
      %s32 = sadd.s32 %s31, 1
      %s33 = scalar_select %p30, %s31, %s32
      %p36 = pneg %p30
      %p37 = scmp.eq.s32.totalorder %s21, 2
      %p38 = por %p36, %p37
      %p39 = scmp.ne.s32.totalorder %s31, %s34
      %p40 = scmp.eq.s32.totalorder %s21, 0
      %p41 = por %p39, %p40
      %p42 = scmp.ne.s32.totalorder %s31, %s34
      %p43 = scmp.eq.s32.totalorder %s26, 2
      %p44 = por %p42, %p43
      %p45 = scmp.ne.s32.totalorder %s34, %s35
      %p46 = scmp.eq.s32.totalorder %s26, 0
      %p47 = por %p45, %p46
      %p48 = scmp.ne.s32.totalorder %s34, %s35
      %p49 = scmp.eq.s32.totalorder %s27, 2
      %p50 = por %p48, %p49
      %p52 = scmp.ne.s32.totalorder %s35, %s51
      %p53 = scmp.eq.s32.totalorder %s27, 0
      %p54 = por %p52, %p53
      %s55 = ssub.s32 %s21, %s28
      %p56 = scmp.eq.s32.totalorder %s55, 0
      %s58 = sadd.s32 %s57, 1
      %s59 = scalar_select %p56, %s57, %s58
      %p62 = pneg %p56
      %p63 = scmp.eq.s32.totalorder %s21, 2
      %p64 = por %p62, %p63
      %p65 = scmp.ne.s32.totalorder %s57, %s60
      %p66 = scmp.eq.s32.totalorder %s21, 0
      %p67 = por %p65, %p66
      %p68 = scmp.ne.s32.totalorder %s57, %s60
      %p69 = scmp.eq.s32.totalorder %s26, 2
      %p70 = por %p68, %p69
      %p71 = scmp.ne.s32.totalorder %s60, %s61
      %p72 = scmp.eq.s32.totalorder %s26, 0
      %p73 = por %p71, %p72
      %p74 = scmp.ne.s32.totalorder %s60, %s61
      %p75 = scmp.eq.s32.totalorder %s27, 2
      %p76 = por %p74, %p75
      %p78 = scmp.ne.s32.totalorder %s61, %s77
      %p79 = scmp.eq.s32.totalorder %s27, 0
      %p80 = por %p78, %p79
      %s82 = sadd.s32 %s81, 1
      %p85 = scmp.eq.s32.totalorder %s21, 2
      %p86 = scmp.ne.s32.totalorder %s81, %s83
      %p87 = scmp.eq.s32.totalorder %s21, 0
      %p88 = por %p86, %p87
      %p89 = scmp.ne.s32.totalorder %s81, %s83
      %p90 = scmp.eq.s32.totalorder %s26, 2
      %p91 = por %p89, %p90
      %p92 = scmp.ne.s32.totalorder %s83, %s84
      %p93 = scmp.eq.s32.totalorder %s26, 0
      %p94 = por %p92, %p93
      %p95 = scmp.ne.s32.totalorder %s83, %s84
      %p96 = scmp.eq.s32.totalorder %s27, 2
      %p97 = por %p95, %p96
      %p99 = scmp.ne.s32.totalorder %s84, %s98
      %p100 = scmp.eq.s32.totalorder %s27, 0
      %p101 = por %p99, %p100
      %s103 = sadd.s32 %s102, 1
      %p106 = scmp.eq.s32.totalorder %s21, 2
      %p107 = scmp.ne.s32.totalorder %s102, %s104
      %p108 = scmp.eq.s32.totalorder %s21, 0
      %p109 = por %p107, %p108
      %p110 = scmp.ne.s32.totalorder %s102, %s104
      %p111 = scmp.eq.s32.totalorder %s26, 2
      %p112 = por %p110, %p111
      %p113 = scmp.ne.s32.totalorder %s104, %s105
      %p114 = scmp.eq.s32.totalorder %s26, 0
      %p115 = por %p113, %p114
      %p116 = scmp.ne.s32.totalorder %s104, %s105
      %p117 = scmp.eq.s32.totalorder %s27, 2
      %p118 = por %p116, %p117
      %p120 = scmp.ne.s32.totalorder %s105, %s119
      %p121 = scmp.eq.s32.totalorder %s27, 0
      %p122 = por %p120, %p121
      %s124 = sadd.s32 %s123, 1
      %p127 = scmp.eq.s32.totalorder %s21, 2
      %p128 = scmp.ne.s32.totalorder %s123, %s125
      %p129 = scmp.eq.s32.totalorder %s21, 0
      %p130 = por %p128, %p129
      %p131 = scmp.ne.s32.totalorder %s123, %s125
      %p132 = scmp.eq.s32.totalorder %s26, 2
      %p133 = por %p131, %p132
      %p134 = scmp.ne.s32.totalorder %s125, %s126
      %p135 = scmp.eq.s32.totalorder %s26, 0
      %p136 = por %p134, %p135
      %p137 = scmp.ne.s32.totalorder %s125, %s126
      %p138 = scmp.eq.s32.totalorder %s27, 2
      %p139 = por %p137, %p138
      %p141 = scmp.ne.s32.totalorder %s126, %s140
      %p142 = scmp.eq.s32.totalorder %s27, 0
      %p143 = por %p141, %p142
      %s145 = sadd.s32 %s144, 1
      %p148 = scmp.eq.s32.totalorder %s21, 2
      %p149 = scmp.ne.s32.totalorder %s144, %s146
      %p150 = scmp.eq.s32.totalorder %s21, 0
      %p151 = por %p149, %p150
      %p152 = scmp.ne.s32.totalorder %s144, %s146
      %p153 = scmp.eq.s32.totalorder %s26, 2
      %p154 = por %p152, %p153
      %p155 = scmp.ne.s32.totalorder %s146, %s147
      %p156 = scmp.eq.s32.totalorder %s26, 0
      %p157 = por %p155, %p156
      %p158 = scmp.ne.s32.totalorder %s146, %s147
      %p159 = scmp.eq.s32.totalorder %s27, 2
      %p160 = por %p158, %p159
      %p162 = scmp.ne.s32.totalorder %s147, %s161
      %p163 = scmp.eq.s32.totalorder %s27, 0
      %p164 = por %p162, %p163
      %s166 = sadd.s32 %s165, 1
      %p169 = scmp.eq.s32.totalorder %s21, 2
      %p170 = scmp.ne.s32.totalorder %s165, %s167
      %p171 = scmp.eq.s32.totalorder %s21, 0
      %p172 = por %p170, %p171
      %p173 = scmp.ne.s32.totalorder %s165, %s167
      %p174 = scmp.eq.s32.totalorder %s26, 2
      %p175 = por %p173, %p174
      %p176 = scmp.ne.s32.totalorder %s167, %s168
      %p177 = scmp.eq.s32.totalorder %s26, 0
      %p178 = por %p176, %p177
      %p179 = scmp.ne.s32.totalorder %s167, %s168
      %p180 = scmp.eq.s32.totalorder %s27, 2
      %p181 = por %p179, %p180
      %p183 = scmp.ne.s32.totalorder %s168, %s182
      %p184 = scmp.eq.s32.totalorder %s27, 0
      %p185 = por %p183, %p184
      %s186 = ssub.s32 %s21, %s28
      %p187 = scmp.eq.s32.totalorder %s186, 0
      %s189 = sadd.s32 %s188, 1
      %s190 = scalar_select %p187, %s188, %s189
      %p193 = pneg %p187
      %p194 = scmp.eq.s32.totalorder %s21, 2
      %p195 = por %p193, %p194
      %p196 = scmp.ne.s32.totalorder %s188, %s191
      %p197 = scmp.eq.s32.totalorder %s21, 0
      %p198 = por %p196, %p197
      %p199 = scmp.ne.s32.totalorder %s188, %s191
      %p200 = scmp.eq.s32.totalorder %s26, 2
      %p201 = por %p199, %p200
      %p202 = scmp.ne.s32.totalorder %s191, %s192
      %p203 = scmp.eq.s32.totalorder %s26, 0
      %p204 = por %p202, %p203
      %p205 = scmp.ne.s32.totalorder %s191, %s192
      %p206 = scmp.eq.s32.totalorder %s27, 2
      %p207 = por %p205, %p206
      %p209 = scmp.ne.s32.totalorder %s192, %s208
      %p210 = scmp.eq.s32.totalorder %s27, 0
      %p211 = por %p209, %p210
      %p212 = scmp.le.s32.totalorder 1, %s21
      %p213 = scmp.lt.s32.totalorder %s21, 4
      %p214 = pnand %p212, %p213
      %p215 = pneg %p214
      // Predicated region
      $region9: #{tpu_custom_call.1} parent=5 // pred_check
        _
      $region10: #{tpu_custom_call.1} parent=5 // pred_check_branch
        %217 = sbr.rel (%p214) target = $region12
      $region11: #{tpu_custom_call.1} parent=5 // pred_region
        %s218 = ssub.s32 %s21, 1
        // Predicated region
        $region13: #{tpu_custom_call.1} parent=11 // pred_check
          %p219 = pneg %p94
        $region14: #{tpu_custom_call.1} parent=11 // pred_check_branch
          %221 = sbr.rel (%p219) target = $region16
        $region15: #{tpu_custom_call.1} parent=11 // pred_region
          %s223 = ssub.s32 4096, 4096
          %224 = vsyncadd [#allocation6], %s223
          %s225 = sshll.u32 [#allocation7], 4
          %s226 = int_to_ptr.vmem [resolvable:$true] %s225
          %231 = dma.hbm_to_vmem [thread:$0]  %s2, 4096, %s226, [#allocation6], 256, 256, 16
        $region16: #{tpu_custom_call.1} parent=11 // pred_fallthru
          _
        // Predicated region
        $region17: #{tpu_custom_call.1} parent=11 // pred_check
          %p232 = pneg %p115
        $region18: #{tpu_custom_call.1} parent=11 // pred_check_branch
          %234 = sbr.rel (%p232) target = $region20
        $region19: #{tpu_custom_call.1} parent=11 // pred_region
          %s236 = ssub.s32 4096, 4096
          %237 = vsyncadd [#allocation9], %s236
          %s238 = sshll.u32 [#allocation8], 4
          %s239 = int_to_ptr.vmem [resolvable:$true] %s238
          %244 = dma.hbm_to_vmem [thread:$0]  %s3, 4096, %s239, [#allocation9], 256, 256, 16
        $region20: #{tpu_custom_call.1} parent=11 // pred_fallthru
          _
        // Predicated region
        $region21: #{tpu_custom_call.1} parent=11 // pred_check
          %p245 = pneg %p136
        $region22: #{tpu_custom_call.1} parent=11 // pred_check_branch
          %247 = sbr.rel (%p245) target = $region24
        $region23: #{tpu_custom_call.1} parent=11 // pred_region
          _
        $region24: #{tpu_custom_call.1} parent=11 // pred_fallthru
          _
        // Predicated region
        $region25: #{tpu_custom_call.1} parent=11 // pred_check
          %p248 = pneg %p157
        $region26: #{tpu_custom_call.1} parent=11 // pred_check_branch
          %250 = sbr.rel (%p248) target = $region28
        $region27: #{tpu_custom_call.1} parent=11 // pred_region
          _
        $region28: #{tpu_custom_call.1} parent=11 // pred_fallthru
          _
        // Predicated region
        $region29: #{tpu_custom_call.1} parent=11 // pred_check
          %p251 = pneg %p178
        $region30: #{tpu_custom_call.1} parent=11 // pred_check_branch
          %253 = sbr.rel (%p251) target = $region32
        $region31: #{tpu_custom_call.1} parent=11 // pred_region
          _
        $region32: #{tpu_custom_call.1} parent=11 // pred_fallthru
          _
      $region12: #{tpu_custom_call.1} parent=5 // pred_fallthru
        _
      %p254 = scmp.lt.s32.totalorder %s21, 3
      // Predicated region
      $region33: #{tpu_custom_call.1} parent=5 // pred_check
        %p255 = pneg %p254
      $region34: #{tpu_custom_call.1} parent=5 // pred_check_branch
        %257 = sbr.rel (%p255) target = $region36
      $region35: #{tpu_custom_call.1} parent=5 // pred_region
        // Predicated region
        $region37: #{tpu_custom_call.1} parent=35 // pred_check
          %p258 = pneg %p41
        $region38: #{tpu_custom_call.1} parent=35 // pred_check_branch
          %260 = sbr.rel (%p258) target = $region40
        $region39: #{tpu_custom_call.1} parent=35 // pred_region
          %s261 = sand.u32 %s31, 1
          %s262 = scalar_lea.sflag [#allocation4], %s261
          %s263 = sand.u32 %s31, 1
          %s264 = smul.addr %s263, 8
          %s265 = scalar_lea.vmem [#allocation3], %s264
          %s267 = ssub.s32 128, 128
          %268 = vsyncadd %s262, %s267
          %s269 = smul.addr %s21, 128
          %s270 = scalar_lea.hbm %s0, %s269
          %s272 = sshll.u32 %s265, 4
          %s273 = int_to_ptr.vmem [resolvable:$true] %s272
          %275 = dma.hbm_to_vmem [thread:$0]  %s270, 128, %s273, %s262
        $region40: #{tpu_custom_call.1} parent=35 // pred_fallthru
          _
        // Predicated region
        $region41: #{tpu_custom_call.1} parent=35 // pred_check
          %p276 = pneg %p67
        $region42: #{tpu_custom_call.1} parent=35 // pred_check_branch
          %278 = sbr.rel (%p276) target = $region44
        $region43: #{tpu_custom_call.1} parent=35 // pred_region
          %s279 = sand.u32 %s21, 1
          %s280 = scalar_lea.sflag [#allocation6], %s279
          %s281 = sand.u32 %s57, 1
          %s282 = smul.addr %s281, 8
          %s283 = scalar_lea.vmem [#allocation5], %s282
          %s285 = ssub.s32 128, 128
          %286 = vsyncadd %s280, %s285
          %s287 = smul.addr %s21, 128
          %s288 = scalar_lea.hbm %s1, %s287
          %s290 = sshll.u32 %s283, 4
          %s291 = int_to_ptr.vmem [resolvable:$true] %s290
          %293 = dma.hbm_to_vmem [thread:$0]  %s288, 128, %s291, %s280
        $region44: #{tpu_custom_call.1} parent=35 // pred_fallthru
          _
      $region36: #{tpu_custom_call.1} parent=5 // pred_fallthru
        _
      %p294 = scmp.le.s32.totalorder 1, %s21
      %p295 = scmp.lt.s32.totalorder %s21, 4
      %p296 = pnand %p294, %p295
      %p297 = pneg %p296
      // Predicated region
      $region45: #{tpu_custom_call.1} parent=5 // pred_check
        _
      $region46: #{tpu_custom_call.1} parent=5 // pred_check_branch
        %299 = sbr.rel (%p296) target = $region48
      $region47: #{tpu_custom_call.1} parent=5 // pred_region
        %s300 = ssub.s32 %s21, 1
        %s301 = sand.u32 %s34, 1
        %s302 = scalar_lea.sflag [#allocation4], %s301
        %s303 = sand.u32 %s34, 1
        %s304 = smul.addr %s303, 8
        %s305 = scalar_lea.vmem [#allocation3], %s304
        // Predicated region
        $region49: #{tpu_custom_call.1} parent=47 // pred_check
          %p306 = pneg %p47
        $region50: #{tpu_custom_call.1} parent=47 // pred_check_branch
          %308 = sbr.rel (%p306) target = $region52
        $region51: #{tpu_custom_call.1} parent=47 // pred_region
          %309 = dma.done %s302, 128
        $region52: #{tpu_custom_call.1} parent=47 // pred_fallthru
          _
        %s310 = sand.u32 %s26, 1
        %s311 = scalar_lea.sflag [#allocation6], %s310
        %s312 = sand.u32 %s60, 1
        %s313 = smul.addr %s312, 8
        %s314 = scalar_lea.vmem [#allocation5], %s313
        // Predicated region
        $region53: #{tpu_custom_call.1} parent=47 // pred_check
          %p315 = pneg %p73
        $region54: #{tpu_custom_call.1} parent=47 // pred_check_branch
          %317 = sbr.rel (%p315) target = $region56
        $region55: #{tpu_custom_call.1} parent=47 // pred_region
          %318 = dma.done %s311, 128
        $region56: #{tpu_custom_call.1} parent=47 // pred_fallthru
          _
        // Predicated region
        $region57: #{tpu_custom_call.1} parent=47 // pred_check
          %p319 = pneg %p94
        $region58: #{tpu_custom_call.1} parent=47 // pred_check_branch
          %321 = sbr.rel (%p319) target = $region60
        $region59: #{tpu_custom_call.1} parent=47 // pred_region
          %322 = dma.done [#allocation6], 4096
        $region60: #{tpu_custom_call.1} parent=47 // pred_fallthru
          _
        // Predicated region
        $region61: #{tpu_custom_call.1} parent=47 // pred_check
          %p323 = pneg %p115
        $region62: #{tpu_custom_call.1} parent=47 // pred_check_branch
          %325 = sbr.rel (%p323) target = $region64
        $region63: #{tpu_custom_call.1} parent=47 // pred_region
          %326 = dma.done [#allocation9], 4096
        $region64: #{tpu_custom_call.1} parent=47 // pred_fallthru
          _
        %s327 = sand.u32 %s34, 1
        %s328 = scalar_lea.sflag [#allocation4], %s327
        %s329 = sand.u32 %s34, 1
        %s330 = smul.addr %s329, 8
        %s331 = scalar_lea.vmem [#allocation3], %s330
        %p332 = pneg %p47
        %p333 = pneg %p44
        %s334 = sand.u32 %s26, 1
        %s335 = scalar_lea.sflag [#allocation6], %s334
        %s336 = sand.u32 %s60, 1
        %s337 = smul.addr %s336, 8
        %s338 = scalar_lea.vmem [#allocation5], %s337
        %p339 = pneg %p73
        %p340 = pneg %p70
        %p341 = pneg %p94
        %p342 = pneg %p91
        %p343 = pneg %p115
        %p344 = pneg %p112
        %p345 = pneg %p136
        %p346 = pneg %p133
        %p347 = pneg %p157
        %p348 = pneg %p154
        %p349 = pneg %p178
        %p350 = pneg %p175
        %p351 = pneg %p204
        %p352 = pneg %p201
        %p353 = scmp.lt.s32.totalorder %s26, 2
        %s354 = scalar_select %p353, %s26, 2
        %s355 = smul.addr %s354, 8
        %s356 = scalar_lea.vmem %s7, %s355
        %p357 = scmp.lt.s32.totalorder %s26, 2
        %s358 = scalar_select %p357, %s26, 2
        %s359 = smul.addr %s358, 8
        %s360 = scalar_lea.vmem %s7, %s359
        %v362 = vld [vmem:[%s305] sm:$0xff]
        %v363 = vpack.c.bf16 %v362, %v362
        %v364 = vld [vmem:[%s314] sm:$0xff]
        %v365 = vpack.c.bf16 %v364, %v364
        %v366 = vld [vmem:[#allocation7] sm:$0xff]
        %v367 = vld [vmem:[#allocation7 + $0x8] sm:$0xff]
        %v368 = vld [vmem:[#allocation7 + $0x10] sm:$0xff]
        %v369 = vld [vmem:[#allocation7 + $0x18] sm:$0xff]
        %v370 = vld [vmem:[#allocation7 + $0x20] sm:$0xff]
        %v371 = vld [vmem:[#allocation7 + $0x28] sm:$0xff]
        %v372 = vld [vmem:[#allocation7 + $0x30] sm:$0xff]
        %v373 = vld [vmem:[#allocation7 + $0x38] sm:$0xff]
        %v374 = vld [vmem:[#allocation7 + $0x40] sm:$0xff]
        %v375 = vld [vmem:[#allocation7 + $0x48] sm:$0xff]
        %v376 = vld [vmem:[#allocation7 + $0x50] sm:$0xff]
        %v377 = vld [vmem:[#allocation7 + $0x58] sm:$0xff]
        %v378 = vld [vmem:[#allocation7 + $0x60] sm:$0xff]
        %v379 = vld [vmem:[#allocation7 + $0x68] sm:$0xff]
        %v380 = vld [vmem:[#allocation7 + $0x70] sm:$0xff]
        %v381 = vld [vmem:[#allocation7 + $0x78] sm:$0xff]
        %v382 = vld [vmem:[#allocation7 + $0x80] sm:$0xff]
        %v383 = vld [vmem:[#allocation7 + $0x88] sm:$0xff]
        %v384 = vld [vmem:[#allocation7 + $0x90] sm:$0xff]
        %v385 = vld [vmem:[#allocation7 + $0x98] sm:$0xff]
        %v386 = vld [vmem:[#allocation7 + $0xa0] sm:$0xff]
        %v387 = vld [vmem:[#allocation7 + $0xa8] sm:$0xff]
        %v388 = vld [vmem:[#allocation7 + $0xb0] sm:$0xff]
        %v389 = vld [vmem:[#allocation7 + $0xb8] sm:$0xff]
        %v390 = vld [vmem:[#allocation7 + $0xc0] sm:$0xff]
        %v391 = vld [vmem:[#allocation7 + $0xc8] sm:$0xff]
        %v392 = vld [vmem:[#allocation7 + $0xd0] sm:$0xff]
        %v393 = vld [vmem:[#allocation7 + $0xd8] sm:$0xff]
        %v394 = vld [vmem:[#allocation7 + $0xe0] sm:$0xff]
        %v395 = vld [vmem:[#allocation7 + $0xe8] sm:$0xff]
        %v396 = vld [vmem:[#allocation7 + $0xf0] sm:$0xff]
        %v397 = vld [vmem:[#allocation7 + $0xf8] sm:$0xff]
        %v398 = vld [vmem:[#allocation8] sm:$0xff]
        %v399 = vld [vmem:[#allocation8 + $0x8] sm:$0xff]
        %v400 = vld [vmem:[#allocation8 + $0x10] sm:$0xff]
        %v401 = vld [vmem:[#allocation8 + $0x18] sm:$0xff]
        %v402 = vld [vmem:[#allocation8 + $0x20] sm:$0xff]
        %v403 = vld [vmem:[#allocation8 + $0x28] sm:$0xff]
        %v404 = vld [vmem:[#allocation8 + $0x30] sm:$0xff]
        %v405 = vld [vmem:[#allocation8 + $0x38] sm:$0xff]
        %v406 = vld [vmem:[#allocation8 + $0x40] sm:$0xff]
        %v407 = vld [vmem:[#allocation8 + $0x48] sm:$0xff]
        %v408 = vld [vmem:[#allocation8 + $0x50] sm:$0xff]
        %v409 = vld [vmem:[#allocation8 + $0x58] sm:$0xff]
        %v410 = vld [vmem:[#allocation8 + $0x60] sm:$0xff]
        %v411 = vld [vmem:[#allocation8 + $0x68] sm:$0xff]
        %v412 = vld [vmem:[#allocation8 + $0x70] sm:$0xff]
        %v413 = vld [vmem:[#allocation8 + $0x78] sm:$0xff]
        %v414 = vld [vmem:[#allocation8 + $0x80] sm:$0xff]
        %v415 = vld [vmem:[#allocation8 + $0x88] sm:$0xff]
        %v416 = vld [vmem:[#allocation8 + $0x90] sm:$0xff]
        %v417 = vld [vmem:[#allocation8 + $0x98] sm:$0xff]
        %v418 = vld [vmem:[#allocation8 + $0xa0] sm:$0xff]
        %v419 = vld [vmem:[#allocation8 + $0xa8] sm:$0xff]
        %v420 = vld [vmem:[#allocation8 + $0xb0] sm:$0xff]
        %v421 = vld [vmem:[#allocation8 + $0xb8] sm:$0xff]
        %v422 = vld [vmem:[#allocation8 + $0xc0] sm:$0xff]
        %v423 = vld [vmem:[#allocation8 + $0xc8] sm:$0xff]
        %v424 = vld [vmem:[#allocation8 + $0xd0] sm:$0xff]
        %v425 = vld [vmem:[#allocation8 + $0xd8] sm:$0xff]
        %v426 = vld [vmem:[#allocation8 + $0xe0] sm:$0xff]
        %v427 = vld [vmem:[#allocation8 + $0xe8] sm:$0xff]
        %v428 = vld [vmem:[#allocation8 + $0xf0] sm:$0xff]
        %v429 = vld [vmem:[#allocation8 + $0xf8] sm:$0xff]
        %v462 = vunpack.c.l.b16 %v398
        %v463 = vunpack.c.h.b16 %v398
        %v464 = vunpack.c.l.b16 %v399
        %v465 = vunpack.c.h.b16 %v399
        %v466 = vunpack.c.l.b16 %v400
        %v467 = vunpack.c.h.b16 %v400
        %v468 = vunpack.c.l.b16 %v401
        %v469 = vunpack.c.h.b16 %v401
        %v470 = vunpack.c.l.b16 %v402
        %v471 = vunpack.c.h.b16 %v402
        %v472 = vunpack.c.l.b16 %v403
        %v473 = vunpack.c.h.b16 %v403
        %v474 = vunpack.c.l.b16 %v404
        %v475 = vunpack.c.h.b16 %v404
        %v476 = vunpack.c.l.b16 %v405
        %v477 = vunpack.c.h.b16 %v405
        %v478 = vunpack.c.l.b16 %v406
        %v479 = vunpack.c.h.b16 %v406
        %v480 = vunpack.c.l.b16 %v407
        %v481 = vunpack.c.h.b16 %v407
        %v482 = vunpack.c.l.b16 %v408
        %v483 = vunpack.c.h.b16 %v408
        %v484 = vunpack.c.l.b16 %v409
        %v485 = vunpack.c.h.b16 %v409
        %v486 = vunpack.c.l.b16 %v410
        %v487 = vunpack.c.h.b16 %v410
        %v488 = vunpack.c.l.b16 %v411
        %v489 = vunpack.c.h.b16 %v411
        %v490 = vunpack.c.l.b16 %v412
        %v491 = vunpack.c.h.b16 %v412
        %v492 = vunpack.c.l.b16 %v413
        %v493 = vunpack.c.h.b16 %v413
        %v494 = vunpack.c.l.b16 %v414
        %v495 = vunpack.c.h.b16 %v414
        %v496 = vunpack.c.l.b16 %v415
        %v497 = vunpack.c.h.b16 %v415
        %v498 = vunpack.c.l.b16 %v416
        %v499 = vunpack.c.h.b16 %v416
        %v500 = vunpack.c.l.b16 %v417
        %v501 = vunpack.c.h.b16 %v417
        %v502 = vunpack.c.l.b16 %v418
        %v503 = vunpack.c.h.b16 %v418
        %v504 = vunpack.c.l.b16 %v419
        %v505 = vunpack.c.h.b16 %v419
        %v506 = vunpack.c.l.b16 %v420
        %v507 = vunpack.c.h.b16 %v420
        %v508 = vunpack.c.l.b16 %v421
        %v509 = vunpack.c.h.b16 %v421
        %v510 = vunpack.c.l.b16 %v422
        %v511 = vunpack.c.h.b16 %v422
        %v512 = vunpack.c.l.b16 %v423
        %v513 = vunpack.c.h.b16 %v423
        %v514 = vunpack.c.l.b16 %v424
        %v515 = vunpack.c.h.b16 %v424
        %v516 = vunpack.c.l.b16 %v425
        %v517 = vunpack.c.h.b16 %v425
        %v518 = vunpack.c.l.b16 %v426
        %v519 = vunpack.c.h.b16 %v426
        %v520 = vunpack.c.l.b16 %v427
        %v521 = vunpack.c.h.b16 %v427
        %v522 = vunpack.c.l.b16 %v428
        %v523 = vunpack.c.h.b16 %v428
        %v524 = vunpack.c.l.b16 %v429
        %v525 = vunpack.c.h.b16 %v429
        %v526 = vpack.c.b16 %v466, %v462
        %v527 = vpack.c.b16 %v467, %v463
        %v528 = vpack.c.b16 %v468, %v464
        %v529 = vpack.c.b16 %v469, %v465
        %v530 = vpack.c.b16 %v474, %v470
        %v531 = vpack.c.b16 %v475, %v471
        %v532 = vpack.c.b16 %v476, %v472
        %v533 = vpack.c.b16 %v477, %v473
        %v534 = vpack.c.b16 %v482, %v478
        %v535 = vpack.c.b16 %v483, %v479
        %v536 = vpack.c.b16 %v484, %v480
        %v537 = vpack.c.b16 %v485, %v481
        %v538 = vpack.c.b16 %v490, %v486
        %v539 = vpack.c.b16 %v491, %v487
        %v540 = vpack.c.b16 %v492, %v488
        %v541 = vpack.c.b16 %v493, %v489
        %v542 = vpack.c.b16 %v498, %v494
        %v543 = vpack.c.b16 %v499, %v495
        %v544 = vpack.c.b16 %v500, %v496
        %v545 = vpack.c.b16 %v501, %v497
        %v546 = vpack.c.b16 %v506, %v502
        %v547 = vpack.c.b16 %v507, %v503
        %v548 = vpack.c.b16 %v508, %v504
        %v549 = vpack.c.b16 %v509, %v505
        %v550 = vpack.c.b16 %v514, %v510
        %v551 = vpack.c.b16 %v515, %v511
        %v552 = vpack.c.b16 %v516, %v512
        %v553 = vpack.c.b16 %v517, %v513
        %v554 = vpack.c.b16 %v522, %v518
        %v555 = vpack.c.b16 %v523, %v519
        %v556 = vpack.c.b16 %v524, %v520
        %v557 = vpack.c.b16 %v525, %v521
        %590 = vmatprep.subr.bf16.mxu0 %v527
        %591 = vmatpush1.bf16.msra.mxu0 %v526
        %592 = vmatprep.subr.bf16.mxu0 %v531
        %593 = vmatpush1.bf16.msra.mxu0 %v530
        %594 = vmatprep.subr.bf16.mxu0 %v535
        %595 = vmatpush1.bf16.msra.mxu0 %v534
        %596 = vmatprep.subr.bf16.mxu0 %v539
        %597 = vmatpush1.bf16.msra.mxu0 %v538
        %598 = vmatprep.subr.bf16.mxu0 %v543
        %599 = vmatpush1.bf16.msra.mxu0 %v542
        %600 = vmatprep.subr.bf16.mxu0 %v547
        %601 = vmatpush1.bf16.msra.mxu0 %v546
        %602 = vmatprep.subr.bf16.mxu0 %v551
        %603 = vmatpush1.bf16.msra.mxu0 %v550
        %604 = vmatprep.subr.bf16.mxu0 %v555
        %605 = vmatpush1.bf16.msra.mxu0 %v554
        %606 = vmatprep.subr.bf16.mxu0 0
        %607 = vmatpush1.bf16.msra.mxu0 0
        %608 = vmatprep.subr.bf16.mxu0 0
        %609 = vmatpush1.bf16.msra.mxu0 0
        %610 = vmatprep.subr.bf16.mxu0 0
        %611 = vmatpush1.bf16.msra.mxu0 0
        %612 = vmatprep.subr.bf16.mxu0 0
        %613 = vmatpush1.bf16.msra.mxu0 0
        %614 = vmatprep.subr.bf16.mxu0 0
        %615 = vmatpush1.bf16.msra.mxu0 0
        %616 = vmatprep.subr.bf16.mxu0 0
        %617 = vmatpush1.bf16.msra.mxu0 0
        %618 = vmatprep.subr.bf16.mxu0 0
        %619 = vmatpush1.bf16.msra.mxu0 0
        %620 = vmatprep.subr.bf16.mxu0 0
        %621 = vmatpush1.bf16.msra.mxu0 0
        %622 = vmatprep.mubr.bf16.mxu0 0
        %623 = vmatmul.mubr.bf16.gmra.mrb[0].mxu0 %v365
        %v624 = vpop.f32.mrb[0].mxu0
        %v625 = vadd.f32 0.0, %v624
        %v626 = vpop.f32.mrb[0].mxu0
        %v627 = vadd.f32 0.0, %v626
        %v628 = vpop.f32.mrb[0].mxu0
        %v629 = vpop.f32.mrb[0].mxu0
        %630 = vdwg.mxu0
        %631 = vmatprep.subr.bf16.mxu0 %v529
        %632 = vmatpush1.bf16.msra.mxu0 %v528
        %633 = vmatprep.subr.bf16.mxu0 %v533
        %634 = vmatpush1.bf16.msra.mxu0 %v532
        %635 = vmatprep.subr.bf16.mxu0 %v537
        %636 = vmatpush1.bf16.msra.mxu0 %v536
        %637 = vmatprep.subr.bf16.mxu0 %v541
        %638 = vmatpush1.bf16.msra.mxu0 %v540
        %639 = vmatprep.subr.bf16.mxu0 %v545
        %640 = vmatpush1.bf16.msra.mxu0 %v544
        %641 = vmatprep.subr.bf16.mxu0 %v549
        %642 = vmatpush1.bf16.msra.mxu0 %v548
        %643 = vmatprep.subr.bf16.mxu0 %v553
        %644 = vmatpush1.bf16.msra.mxu0 %v552
        %645 = vmatprep.subr.bf16.mxu0 %v557
        %646 = vmatpush1.bf16.msra.mxu0 %v556
        %647 = vmatprep.subr.bf16.mxu0 0
        %648 = vmatpush1.bf16.msra.mxu0 0
        %649 = vmatprep.subr.bf16.mxu0 0
        %650 = vmatpush1.bf16.msra.mxu0 0
        %651 = vmatprep.subr.bf16.mxu0 0
        %652 = vmatpush1.bf16.msra.mxu0 0
        %653 = vmatprep.subr.bf16.mxu0 0
        %654 = vmatpush1.bf16.msra.mxu0 0
        %655 = vmatprep.subr.bf16.mxu0 0
        %656 = vmatpush1.bf16.msra.mxu0 0
        %657 = vmatprep.subr.bf16.mxu0 0
        %658 = vmatpush1.bf16.msra.mxu0 0
        %659 = vmatprep.subr.bf16.mxu0 0
        %660 = vmatpush1.bf16.msra.mxu0 0
        %661 = vmatprep.subr.bf16.mxu0 0
        %662 = vmatpush1.bf16.msra.mxu0 0
        %663 = vmatprep.mubr.bf16.mxu0 0
        %664 = vmatmul.mubr.bf16.gmra.mrb[0].mxu0 %v365
        %v665 = vpop.f32.mrb[0].mxu0
        %v666 = vadd.f32 0.0, %v665
        %v667 = vpop.f32.mrb[0].mxu0
        %v668 = vadd.f32 0.0, %v667
        %v669 = vpop.f32.mrb[0].mxu0
        %v670 = vpop.f32.mrb[0].mxu0
        %671 = vdwg.mxu0
        %v704 = vunpack.c.l.b16 %v366
        %v705 = vunpack.c.h.b16 %v366
        %v706 = vunpack.c.l.b16 %v367
        %v707 = vunpack.c.h.b16 %v367
        %v708 = vunpack.c.l.b16 %v368
        %v709 = vunpack.c.h.b16 %v368
        %v710 = vunpack.c.l.b16 %v369
        %v711 = vunpack.c.h.b16 %v369
        %v712 = vunpack.c.l.b16 %v370
        %v713 = vunpack.c.h.b16 %v370
        %v714 = vunpack.c.l.b16 %v371
        %v715 = vunpack.c.h.b16 %v371
        %v716 = vunpack.c.l.b16 %v372
        %v717 = vunpack.c.h.b16 %v372
        %v718 = vunpack.c.l.b16 %v373
        %v719 = vunpack.c.h.b16 %v373
        %v720 = vunpack.c.l.b16 %v374
        %v721 = vunpack.c.h.b16 %v374
        %v722 = vunpack.c.l.b16 %v375
        %v723 = vunpack.c.h.b16 %v375
        %v724 = vunpack.c.l.b16 %v376
        %v725 = vunpack.c.h.b16 %v376
        %v726 = vunpack.c.l.b16 %v377
        %v727 = vunpack.c.h.b16 %v377
        %v728 = vunpack.c.l.b16 %v378
        %v729 = vunpack.c.h.b16 %v378
        %v730 = vunpack.c.l.b16 %v379
        %v731 = vunpack.c.h.b16 %v379
        %v732 = vunpack.c.l.b16 %v380
        %v733 = vunpack.c.h.b16 %v380
        %v734 = vunpack.c.l.b16 %v381
        %v735 = vunpack.c.h.b16 %v381
        %v736 = vunpack.c.l.b16 %v382
        %v737 = vunpack.c.h.b16 %v382
        %v738 = vunpack.c.l.b16 %v383
        %v739 = vunpack.c.h.b16 %v383
        %v740 = vunpack.c.l.b16 %v384
        %v741 = vunpack.c.h.b16 %v384
        %v742 = vunpack.c.l.b16 %v385
        %v743 = vunpack.c.h.b16 %v385
        %v744 = vunpack.c.l.b16 %v386
        %v745 = vunpack.c.h.b16 %v386
        %v746 = vunpack.c.l.b16 %v387
        %v747 = vunpack.c.h.b16 %v387
        %v748 = vunpack.c.l.b16 %v388
        %v749 = vunpack.c.h.b16 %v388
        %v750 = vunpack.c.l.b16 %v389
        %v751 = vunpack.c.h.b16 %v389
        %v752 = vunpack.c.l.b16 %v390
        %v753 = vunpack.c.h.b16 %v390
        %v754 = vunpack.c.l.b16 %v391
        %v755 = vunpack.c.h.b16 %v391
        %v756 = vunpack.c.l.b16 %v392
        %v757 = vunpack.c.h.b16 %v392
        %v758 = vunpack.c.l.b16 %v393
        %v759 = vunpack.c.h.b16 %v393
        %v760 = vunpack.c.l.b16 %v394
        %v761 = vunpack.c.h.b16 %v394
        %v762 = vunpack.c.l.b16 %v395
        %v763 = vunpack.c.h.b16 %v395
        %v764 = vunpack.c.l.b16 %v396
        %v765 = vunpack.c.h.b16 %v396
        %v766 = vunpack.c.l.b16 %v397
        %v767 = vunpack.c.h.b16 %v397
        %v768 = vpack.c.b16 %v708, %v704
        %v769 = vpack.c.b16 %v709, %v705
        %v770 = vpack.c.b16 %v710, %v706
        %v771 = vpack.c.b16 %v711, %v707
        %v772 = vpack.c.b16 %v716, %v712
        %v773 = vpack.c.b16 %v717, %v713
        %v774 = vpack.c.b16 %v718, %v714
        %v775 = vpack.c.b16 %v719, %v715
        %v776 = vpack.c.b16 %v724, %v720
        %v777 = vpack.c.b16 %v725, %v721
        %v778 = vpack.c.b16 %v726, %v722
        %v779 = vpack.c.b16 %v727, %v723
        %v780 = vpack.c.b16 %v732, %v728
        %v781 = vpack.c.b16 %v733, %v729
        %v782 = vpack.c.b16 %v734, %v730
        %v783 = vpack.c.b16 %v735, %v731
        %v784 = vpack.c.b16 %v740, %v736
        %v785 = vpack.c.b16 %v741, %v737
        %v786 = vpack.c.b16 %v742, %v738
        %v787 = vpack.c.b16 %v743, %v739
        %v788 = vpack.c.b16 %v748, %v744
        %v789 = vpack.c.b16 %v749, %v745
        %v790 = vpack.c.b16 %v750, %v746
        %v791 = vpack.c.b16 %v751, %v747
        %v792 = vpack.c.b16 %v756, %v752
        %v793 = vpack.c.b16 %v757, %v753
        %v794 = vpack.c.b16 %v758, %v754
        %v795 = vpack.c.b16 %v759, %v755
        %v796 = vpack.c.b16 %v764, %v760
        %v797 = vpack.c.b16 %v765, %v761
        %v798 = vpack.c.b16 %v766, %v762
        %v799 = vpack.c.b16 %v767, %v763
        %832 = vmatprep.subr.bf16.mxu0 %v769
        %833 = vmatpush1.bf16.msra.mxu0 %v768
        %834 = vmatprep.subr.bf16.mxu0 %v773
        %835 = vmatpush1.bf16.msra.mxu0 %v772
        %836 = vmatprep.subr.bf16.mxu0 %v777
        %837 = vmatpush1.bf16.msra.mxu0 %v776
        %838 = vmatprep.subr.bf16.mxu0 %v781
        %839 = vmatpush1.bf16.msra.mxu0 %v780
        %840 = vmatprep.subr.bf16.mxu0 %v785
        %841 = vmatpush1.bf16.msra.mxu0 %v784
        %842 = vmatprep.subr.bf16.mxu0 %v789
        %843 = vmatpush1.bf16.msra.mxu0 %v788
        %844 = vmatprep.subr.bf16.mxu0 %v793
        %845 = vmatpush1.bf16.msra.mxu0 %v792
        %846 = vmatprep.subr.bf16.mxu0 %v797
        %847 = vmatpush1.bf16.msra.mxu0 %v796
        %848 = vmatprep.subr.bf16.mxu0 0
        %849 = vmatpush1.bf16.msra.mxu0 0
        %850 = vmatprep.subr.bf16.mxu0 0
        %851 = vmatpush1.bf16.msra.mxu0 0
        %852 = vmatprep.subr.bf16.mxu0 0
        %853 = vmatpush1.bf16.msra.mxu0 0
        %854 = vmatprep.subr.bf16.mxu0 0
        %855 = vmatpush1.bf16.msra.mxu0 0
        %856 = vmatprep.subr.bf16.mxu0 0
        %857 = vmatpush1.bf16.msra.mxu0 0
        %858 = vmatprep.subr.bf16.mxu0 0
        %859 = vmatpush1.bf16.msra.mxu0 0
        %860 = vmatprep.subr.bf16.mxu0 0
        %861 = vmatpush1.bf16.msra.mxu0 0
        %862 = vmatprep.subr.bf16.mxu0 0
        %863 = vmatpush1.bf16.msra.mxu0 0
        %864 = vmatprep.mubr.bf16.mxu0 0
        %865 = vmatmul.mubr.bf16.gmra.mrb[0].mxu0 %v363
        %v866 = vpop.f32.mrb[0].mxu0
        %v867 = vadd.f32 %v625, %v866
        %v868 = vpop.f32.mrb[0].mxu0
        %v869 = vadd.f32 %v627, %v868
        %v870 = vpop.f32.mrb[0].mxu0
        %v871 = vpop.f32.mrb[0].mxu0
        %872 = vdwg.mxu0
        %873 = vmatprep.subr.bf16.mxu0 %v771
        %874 = vmatpush1.bf16.msra.mxu0 %v770
        %875 = vmatprep.subr.bf16.mxu0 %v775
        %876 = vmatpush1.bf16.msra.mxu0 %v774
        %877 = vmatprep.subr.bf16.mxu0 %v779
        %878 = vmatpush1.bf16.msra.mxu0 %v778
        %879 = vmatprep.subr.bf16.mxu0 %v783
        %880 = vmatpush1.bf16.msra.mxu0 %v782
        %881 = vmatprep.subr.bf16.mxu0 %v787
        %882 = vmatpush1.bf16.msra.mxu0 %v786
        %883 = vmatprep.subr.bf16.mxu0 %v791
        %884 = vmatpush1.bf16.msra.mxu0 %v790
        %885 = vmatprep.subr.bf16.mxu0 %v795
        %886 = vmatpush1.bf16.msra.mxu0 %v794
        %887 = vmatprep.subr.bf16.mxu0 %v799
        %888 = vmatpush1.bf16.msra.mxu0 %v798
        %889 = vmatprep.subr.bf16.mxu0 0
        %890 = vmatpush1.bf16.msra.mxu0 0
        %891 = vmatprep.subr.bf16.mxu0 0
        %892 = vmatpush1.bf16.msra.mxu0 0
        %893 = vmatprep.subr.bf16.mxu0 0
        %894 = vmatpush1.bf16.msra.mxu0 0
        %895 = vmatprep.subr.bf16.mxu0 0
        %896 = vmatpush1.bf16.msra.mxu0 0
        %897 = vmatprep.subr.bf16.mxu0 0
        %898 = vmatpush1.bf16.msra.mxu0 0
        %899 = vmatprep.subr.bf16.mxu0 0
        %900 = vmatpush1.bf16.msra.mxu0 0
        %901 = vmatprep.subr.bf16.mxu0 0
        %902 = vmatpush1.bf16.msra.mxu0 0
        %903 = vmatprep.subr.bf16.mxu0 0
        %904 = vmatpush1.bf16.msra.mxu0 0
        %905 = vmatprep.mubr.bf16.mxu0 0
        %906 = vmatmul.mubr.bf16.gmra.mrb[0].mxu0 %v363
        %v907 = vpop.f32.mrb[0].mxu0
        %v908 = vadd.f32 %v666, %v907
        %v909 = vpop.f32.mrb[0].mxu0
        %v910 = vadd.f32 %v668, %v909
        %v911 = vpop.f32.mrb[0].mxu0
        %v912 = vpop.f32.mrb[0].mxu0
        %913 = vdwg.mxu0
        %v914 = vld [vmem:[%s4] sm:$0xf]
        %v916 = vlaneseq
        %v917 = vshrl.u32 %v916, 7
        %v918 = vsub.s32 0, %v917
        %v919 = vrot.slane %v914, %v918
        %v920 = vlaneseq
        %v921 = vshrl.u32 %v920, 7
        %v922 = vsub.s32 1, %v921
        %v923 = vrot.slane %v914, %v922
        %v924 = vlaneseq
        %v925 = vshrl.u32 %v924, 7
        %v926 = vsub.s32 2, %v925
        %v927 = vrot.slane %v914, %v926
        %v928 = vlaneseq
        %v929 = vshrl.u32 %v928, 7
        %v930 = vsub.s32 3, %v929
        %v931 = vrot.slane %v914, %v930
        %v936 = vadd.f32 %v867, %v919
        %v937 = vadd.f32 %v869, %v923
        %v938 = vadd.f32 %v908, %v927
        %v939 = vadd.f32 %v910, %v931
        %v940 = vmax.f32 %v936, 0.0
        %v941 = vmax.f32 %v937, 0.0
        %v942 = vmax.f32 %v938, 0.0
        %v943 = vmax.f32 %v939, 0.0
        %v944 = vld [vmem:[%s5] sm:$0xf]
        %v946 = vlaneseq
        %v947 = vshrl.u32 %v946, 7
        %v948 = vsub.s32 0, %v947
        %v949 = vrot.slane %v944, %v948
        %v950 = vlaneseq
        %v951 = vshrl.u32 %v950, 7
        %v952 = vsub.s32 1, %v951
        %v953 = vrot.slane %v944, %v952
        %v954 = vlaneseq
        %v955 = vshrl.u32 %v954, 7
        %v956 = vsub.s32 2, %v955
        %v957 = vrot.slane %v944, %v956
        %v958 = vlaneseq
        %v959 = vshrl.u32 %v958, 7
        %v960 = vsub.s32 3, %v959
        %v961 = vrot.slane %v944, %v960
        %v966 = vmul.f32 %v940, %v949
        %v967 = vmul.f32 %v941, %v953
        %v968 = vmul.f32 %v942, %v957
        %v969 = vmul.f32 %v943, %v961
        %v970 = vadd.f32 %v966, %v967
        %v971 = vadd.f32 %v970, %v968
        %v972 = vadd.f32 %v971, %v969
        %973 = vadd.xlane.f32.xlu0 %v972
        %v974 = vpop.xlane.xlu0 %973
        %s975 = sld [smem:[#allocation2]]
        %v976 = vstv %s975
        %v977 = vadd.f32 %v974, %v976
        %v978 = vxor.u32 %v977, 2147483648
        %v979 = vmul.f32 %v978, 1.442695
        %v980 = vpow.pop %v979
        %v981 = vadd.f32 %v980, 1.0
        %v982 = vrcp.pop %v981
        %v983 = vmul.f32 1.0, %v982
        %vm984 = vcmask 7168
        %985 = vst.msk [vmem:[%s360] sm:$0xff] %vm984, %v983
        %p986 = scmp.lt.s32.totalorder %s26, 2
        %s987 = scalar_select %p986, %s26, 2
        %s988 = smul.addr %s987, 8
        %s989 = scalar_lea.vmem %s7, %s988
        // Predicated region
        $region65: #{tpu_custom_call.1} parent=47 // pred_check
          %p990 = pneg %p201
        $region66: #{tpu_custom_call.1} parent=47 // pred_check_branch
          %992 = sbr.rel (%p990) target = $region68
        $region67: #{tpu_custom_call.1} parent=47 // pred_region
          _
        $region68: #{tpu_custom_call.1} parent=47 // pred_fallthru
          _
      $region48: #{tpu_custom_call.1} parent=5 // pred_fallthru
        _
      %p993 = scmp.le.s32.totalorder 2, %s21
      // Predicated region
      $region69: #{tpu_custom_call.1} parent=5 // pred_check
        %p994 = pneg %p993
      $region70: #{tpu_custom_call.1} parent=5 // pred_check_branch
        %996 = sbr.rel (%p994) target = $region72
      $region71: #{tpu_custom_call.1} parent=5 // pred_region
        %s997 = ssub.s32 %s21, 2
        // Predicated region
        $region73: #{tpu_custom_call.1} parent=71 // pred_check
          %p998 = pneg %p207
        $region74: #{tpu_custom_call.1} parent=71 // pred_check_branch
          %1000 = sbr.rel (%p998) target = $region76
        $region75: #{tpu_custom_call.1} parent=71 // pred_region
          %p1001 = scmp.lt.s32.totalorder %s27, 2
          %s1002 = scalar_select %p1001, %s27, 2
          %s1003 = smul.addr %s1002, 8
          %s1004 = scalar_lea.vmem %s7, %s1003
        $region76: #{tpu_custom_call.1} parent=71 // pred_fallthru
          _
      $region72: #{tpu_custom_call.1} parent=5 // pred_fallthru
        _
    $region6: #{tpu_custom_call.1} parent=1 // loop_footer
      %s25 = sadd.s32 1, %s21
    $region7: #{tpu_custom_call.1} parent=1 // loop_footer_branch
      %20 = sbr.rel target = $region3
    $region8: #{tpu_custom_call.1} parent=1 // loop_exit
      _
    %1005 = vsyncpa [#allocation4], 1
    %s1006 = scalar_lea.sflag [#allocation4], 1
    %1007 = vsyncpa %s1006, 1
    %1008 = vsyncpa [#allocation6], 1
    %s1009 = scalar_lea.sflag [#allocation6], 1
    %1010 = vsyncpa %s1009, 1
    %1011 = vsyncpa [#allocation9], 1

</llo_original>
